<compile_context>
chip_gen: v7x
topology: tpu7x:2x2x1
jax: 0.10.0
libtpu: 0.0.40
codegen_flags: <defaults>
</compile_context>

<pallas_src>
import functools

import jax
import jax.numpy as jnp
from jax.experimental import pallas as pl
from jax.experimental.pallas import tpu as pltpu


# ----------------------------- Pallas kernel ------------------------------- #

def _vanet_kernel(x_ref, w1_ref, b1_ref, wq_ref, bq_ref, q_ref):
    """q = relu(x @ W1 + b1) @ Wq + bq  (dueling combine pre-folded into Wq/bq)."""
    h = jnp.maximum(
        jnp.dot(x_ref[...], w1_ref[...], preferred_element_type=jnp.float32)
        + b1_ref[...],
        0.0,
    )
    q_ref[...] = (
        jnp.dot(h, wq_ref[...], preferred_element_type=jnp.float32) + bq_ref[...]
    )


# ------------------------------ Pallas wrapper ------------------------------ #

def _pick_batch_tile(batch):
    """Largest batch tile (multiple of 8) that evenly divides `batch`; None → no grid."""
    if batch < 16 or batch % 8 != 0:
        return None
    for bt in (512, 256, 128, 64, 32, 16, 8):
        if batch % bt == 0:
            return bt
    return None


def _call_pallas(x, w1, b1, wq, bq):
    batch, state_dim = x.shape
    hidden = w1.shape[1]
    padded = wq.shape[1]
    bt = _pick_batch_tile(batch)

    if bt is None:
        # Launch-bound tiny batch: grid=(), whole arrays resident in VMEM.
        vmem = pl.BlockSpec(memory_space=pltpu.MemorySpace.VMEM)
        return pl.pallas_call(
            _vanet_kernel,
            in_specs=[vmem] * 5,
            out_specs=vmem,
            out_shape=jax.ShapeDtypeStruct((batch, padded), jnp.float32),
        )(x, w1, b1, wq, bq)

    # Batch-tiled path: parallel grid axis (shards across TCs on v7x).
    return pl.pallas_call(
        _vanet_kernel,
        grid=(batch // bt,),
        in_specs=[
            pl.BlockSpec((bt, state_dim), lambda i: (i, 0)),
            pl.BlockSpec((state_dim, hidden), lambda i: (0, 0)),
            pl.BlockSpec((1, hidden), lambda i: (0, 0)),
            pl.BlockSpec((hidden, padded), lambda i: (0, 0)),
            pl.BlockSpec((1, padded), lambda i: (0, 0)),
        ],
        out_specs=pl.BlockSpec((bt, padded), lambda i: (i, 0)),
        out_shape=jax.ShapeDtypeStruct((batch, padded), jnp.float32),
        compiler_params=pltpu.CompilerParams(
            dimension_semantics=("parallel",)),
    )(x, w1, b1, wq, bq)


@functools.partial(jax.jit, static_argnames=("action_dims",))
def vanet_forward_fused(x, fused, action_dims):
    """Returns list of per-head Q tensors. `fused` comes from prepare_fused_params."""
    q_all = _call_pallas(x, fused["w1"], fused["b1"], fused["wq"], fused["bq"])
    qs = []
    off = 0
    for a in action_dims:
        qs.append(q_all[:, off:off + a])
        off += a
    return qs


# --------------------- One-time parameter preparation ----------------------- #

def prepare_fused_params(params, action_dims, lane_pad=128):
    """Fold dueling combine into head weights; pad output width to lane_pad multiple.

    Q_i = v + (adv_i - mean(adv_i))
        = h @ (wv 1^T + Wa_i (I - 11^T/A_i)) + (bv + ba_i - mean(ba_i))
    Done ONCE here so per-call work is only the Pallas kernel.
    """
    w1, b1 = params["fc1"]
    wv, bv = params["value"]  # (H, 1), (1, 1)
    wq_parts, bq_parts = [], []
    for (wa, ba), a in zip(params["advantage"], action_dims):
        ones_row = jnp.ones((1, a), jnp.float32)
        center = jnp.eye(a, dtype=jnp.float32) - ones_row * (1.0 / a)  # I - 11^T/A
        wq_parts.append(wv @ ones_row + wa @ center)                   # (H, a)
        bq_parts.append(bv + ba @ center)                              # (1, a)
    wq = jnp.concatenate(wq_parts, axis=1)
    bq = jnp.concatenate(bq_parts, axis=1)

    total_a = sum(action_dims)
    padded = ((total_a + lane_pad - 1) // lane_pad) * lane_pad
    if padded > total_a:  # zero-pad → lane-dense output store, padded cols are 0
        wq = jnp.pad(wq, ((0, 0), (0, padded - total_a)))
        bq = jnp.pad(bq, ((0, 0), (0, padded - total_a)))
    return {"w1": w1, "b1": b1, "wq": wq, "bq": bq}


# ---------------------------- Parameter creation ---------------------------- #

def init_vanet_params(key, state_dim, hidden_dim, action_dims):
    """Deterministic init mimicking PyTorch nn.Linear default (uniform ±1/sqrt(fan_in)).
    Weights stored as (in_features, out_features) = transpose of nn.Linear.weight."""
    def linear(k, fan_in, fan_out):
        kw, kb = jax.random.split(k)
        bound = 1.0 / jnp.sqrt(float(fan_in))
        w = jax.random.uniform(kw, (fan_in, fan_out), jnp.float32, -bound, bound)
        b = jax.random.uniform(kb, (1, fan_out), jnp.float32, -bound, bound)
        return w, b

    n_heads = len(action_dims)
    keys = jax.random.split(key, 2 + n_heads)
    return {
        "fc1": linear(keys[0], state_dim, hidden_dim),
        "value": linear(keys[1], hidden_dim, 1),
        "advantage": [
            linear(keys[2 + i], hidden_dim, a) for i, a in enumerate(action_dims)
        ],
    }


# ------------------------------ Reference (JAX) ----------------------------- #

def vanet_reference(x, params):
    w1, b1 = params["fc1"]
    wv, bv = params["value"]
    h = jax.nn.relu(x @ w1 + b1)
    v = h @ wv + bv
    qs = []
    for wa, ba in params["advantage"]:
        adv = h @ wa + ba
        qs.append(v + (adv - adv.mean(axis=-1, keepdims=True)))
    return qs


# ----------------------------------- main ----------------------------------- #

if __name__ == "__main__":
    key = jax.random.PRNGKey(0)
    state_dim = 16
    hidden_dim = 32
    action_dims = (8, 4)

    k_params, k_x1, k_x2 = jax.random.split(key, 3)
    params = init_vanet_params(k_params, state_dim, hidden_dim, action_dims)
    fused = prepare_fused_params(params, action_dims)  # one-time weight fold

    ok = True

    # Small batch (grid=(), whole-array VMEM path).
    x_small = jax.random.normal(k_x1, (2, state_dim), jnp.float32)
    qs = vanet_forward_fused(x_small, fused, action_dims)
    qs = [jax.block_until_ready(q) for q in qs]
    qs_ref = vanet_reference(x_small, params)
    for q, q_ref, a in zip(qs, qs_ref, action_dims):
        ok &= q.shape == (2, a)
        ok &= bool(jnp.allclose(q, q_ref, atol=1e-5, rtol=1e-5))

    # Larger batch (batch-tiled parallel grid path).
    x_big = jax.random.normal(k_x2, (64, state_dim), jnp.float32)
    qs_b = vanet_forward_fused(x_big, fused, action_dims)
    qs_b = [jax.block_until_ready(q) for q in qs_b]
    qs_b_ref = vanet_reference(x_big, params)
    for q, q_ref, a in zip(qs_b, qs_b_ref, action_dims):
        ok &= q.shape == (64, a)
        ok &= bool(jnp.allclose(q, q_ref, atol=1e-5, rtol=1e-5))

    if not ok:
        raise AssertionError("Pallas VAnet output mismatch vs reference")
    print("KERNEL_OK")
</pallas_src>

<mosaic_0001>
module attributes {stable_mosaic.version = 11 : i64} {
  func.func @_vanet_kernel(%arg0: memref<2x16xf32, #tpu.memory_space<vmem>>, %arg1: memref<16x32xf32, #tpu.memory_space<vmem>>, %arg2: memref<1x32xf32, #tpu.memory_space<vmem>>, %arg3: memref<32x128xf32, #tpu.memory_space<vmem>>, %arg4: memref<1x128xf32, #tpu.memory_space<vmem>>, %arg5: memref<2x128xf32, #tpu.memory_space<vmem>>) attributes {dimension_semantics = [], scalar_prefetch = 0 : i64, scratch_operands = 0 : i64, tpu.core_type = #tpu.core_type<tc>} {
    %c0 = arith.constant 0 : index
    %c0_0 = arith.constant 0 : index
    %0 = vector.load %arg0[%c0, %c0_0] : memref<2x16xf32, #tpu.memory_space<vmem>>, vector<2x16xf32>
    %c0_1 = arith.constant 0 : index
    %c0_2 = arith.constant 0 : index
    %1 = vector.load %arg1[%c0_1, %c0_2] : memref<16x32xf32, #tpu.memory_space<vmem>>, vector<16x32xf32>
    %cst = arith.constant dense<0.000000e+00> : vector<2x32xf32>
    %2 = tpu.matmul %0, %1, %cst {dimension_numbers = #tpu.dot_dimension_numbers<[1], [0], [0], [1], [0, 0, 1, 1], [], []>} : vector<2x16xf32>, vector<16x32xf32>, vector<2x32xf32> -> vector<2x32xf32>
    %c0_3 = arith.constant 0 : index
    %c0_4 = arith.constant 0 : index
    %3 = vector.load %arg2[%c0_3, %c0_4] : memref<1x32xf32, #tpu.memory_space<vmem>>, vector<1x32xf32>
    %4 = vector.broadcast %3 : vector<1x32xf32> to vector<2x32xf32>
    %5 = arith.addf %2, %4 : vector<2x32xf32>
    %cst_5 = arith.constant 0.000000e+00 : f32
    %6 = vector.broadcast %cst_5 : f32 to vector<2x32xf32>
    %7 = arith.maximumf %5, %6 : vector<2x32xf32>
    %c0_6 = arith.constant 0 : index
    %c0_7 = arith.constant 0 : index
    %8 = vector.load %arg3[%c0_6, %c0_7] : memref<32x128xf32, #tpu.memory_space<vmem>>, vector<32x128xf32>
    %cst_8 = arith.constant dense<0.000000e+00> : vector<2x128xf32>
    %9 = tpu.matmul %7, %8, %cst_8 {dimension_numbers = #tpu.dot_dimension_numbers<[1], [0], [0], [1], [0, 0, 1, 1], [], []>} : vector<2x32xf32>, vector<32x128xf32>, vector<2x128xf32> -> vector<2x128xf32>
    %c0_9 = arith.constant 0 : index
    %c0_10 = arith.constant 0 : index
    %10 = vector.load %arg4[%c0_9, %c0_10] : memref<1x128xf32, #tpu.memory_space<vmem>>, vector<1x128xf32>
    %11 = vector.broadcast %10 : vector<1x128xf32> to vector<2x128xf32>
    %12 = arith.addf %9, %11 : vector<2x128xf32>
    %c0_11 = arith.constant 0 : index
    %c0_12 = arith.constant 0 : index
    %13 = vector.load %arg5[%c0_11, %c0_12] : memref<2x128xf32, #tpu.memory_space<vmem>>, vector<2x128xf32>
    tpu.vector_store %arg5[%c0_11, %c0_12], %12 {strides = array<i32>} : memref<2x128xf32, #tpu.memory_space<vmem>>, vector<2x128xf32>,
    return
  }
}

</mosaic_0001>

<llo_original>
// kernel: vanet_forward_fused.1
$region0: #{vanet_forward_fused.1}
  #allocation0 [shape = 'u32[]', space=smem, size = 0x4, offset = 0x4, fixed_abs, tag = 'smem constant byte address 0x4 - core index']
  #allocation1 [shape = 'u32[144,128]{1,0:T(1,128)}', space=vmem, size = 0x12000, scoped, tag = 'internal scratch']
  %s0 = inlined_call_operand.hbm [shape: f32[2,16], index: 0, kind: input, shape index: {}]
  %s1 = inlined_call_operand.hbm [shape: f32[16,32], index: 1, kind: input, shape index: {}]
  %s2 = inlined_call_operand.vmem [shape: f32[1,32], index: 2, kind: input, shape index: {}]
  %s3 = inlined_call_operand.hbm [shape: f32[32,128], index: 3, kind: input, shape index: {}]
  %s4 = inlined_call_operand.vmem [shape: f32[1,128], index: 4, kind: input, shape index: {}]
  %s5 = inlined_call_operand.vmem [shape: f32[2,128], index: 5, kind: output, shape index: {}]
  %s6 = sld [smem:[#allocation0]]
  $region42: #{vanet_forward_fused.1} parent=0
    _
  %s8 = ssub.s32 1, %s6
  %s9 = scalar_select 0, %s8, %s6
  $region1: #{vanet_forward_fused.1} parent=0
    #allocation2 [shape = 'u8[1024]{0}', space=vmem, size = 0x400, scoped, tag = 'input window, operand 0, single buffered']
    #allocation3 [shape = 's32[1]{0}', space=sflag, size = 0x4, scoped, tag = 'scoped memory for vanet_forward_fused.1']
    #allocation4 [shape = 'u8[8192]{0}', space=vmem, size = 0x2000, scoped, tag = 'input window, operand 1, single buffered']
    #allocation5 [shape = 's32[1]{0}', space=sflag, size = 0x4, scoped, tag = 'scoped memory for vanet_forward_fused.1']
    #allocation6 [shape = 'u8[16384]{0}', space=vmem, size = 0x4000, scoped, tag = 'input window, operand 3, single buffered']
    %10 = vsyncpa [#allocation3], 0
    %11 = vsyncpa [#allocation5], 0
    // Predicated region
    $region2: #{vanet_forward_fused.1} parent=1 // pred_check
      _
    $region3: #{vanet_forward_fused.1} parent=1 // pred_check_branch
      %13 = sbr.rel (0) target = $region5
    $region4: #{vanet_forward_fused.1} parent=1 // pred_region
      %s15 = ssub.s32 32, 32
      %16 = vsyncadd [#allocation3], %s15
      %s18 = sshll.u32 [#allocation2], 4
      %s19 = int_to_ptr.vmem [resolvable:$true] %s18
      %21 = dma.hbm_to_vmem [thread:$0]  %s0, 32, %s19, [#allocation3]
    $region5: #{vanet_forward_fused.1} parent=1 // pred_fallthru
      _
    // Predicated region
    $region6: #{vanet_forward_fused.1} parent=1 // pred_check
      _
    $region7: #{vanet_forward_fused.1} parent=1 // pred_check_branch
      %23 = sbr.rel (0) target = $region9
    $region8: #{vanet_forward_fused.1} parent=1 // pred_region
      %s25 = ssub.s32 256, 256
      %26 = vsyncadd [#allocation5], %s25
      %s27 = sshll.u32 [#allocation4], 4
      %s28 = int_to_ptr.vmem [resolvable:$true] %s27
      %33 = dma.hbm_to_vmem [thread:$0]  %s1, 256, %s28, [#allocation5], 128, 128, 8
    $region9: #{vanet_forward_fused.1} parent=1 // pred_fallthru
      _
    // Predicated region
    $region10: #{vanet_forward_fused.1} parent=1 // pred_check
      _
    $region11: #{vanet_forward_fused.1} parent=1 // pred_check_branch
      %35 = sbr.rel (0) target = $region13
    $region12: #{vanet_forward_fused.1} parent=1 // pred_region
      _
    $region13: #{vanet_forward_fused.1} parent=1 // pred_fallthru
      _
    // Predicated region
    $region14: #{vanet_forward_fused.1} parent=1 // pred_check
      _
    $region15: #{vanet_forward_fused.1} parent=1 // pred_check_branch
      %37 = sbr.rel (0) target = $region17
    $region16: #{vanet_forward_fused.1} parent=1 // pred_region
      %s39 = ssub.s32 512, 512
      %40 = vsyncadd [#allocation5], %s39
      %s41 = sshll.u32 [#allocation6], 4
      %s42 = int_to_ptr.vmem [resolvable:$true] %s41
      %47 = dma.hbm_to_vmem [thread:$0]  %s3, 512, %s42, [#allocation5], 128, 128, 8
    $region17: #{vanet_forward_fused.1} parent=1 // pred_fallthru
      _
    // Predicated region
    $region18: #{vanet_forward_fused.1} parent=1 // pred_check
      _
    $region19: #{vanet_forward_fused.1} parent=1 // pred_check_branch
      %49 = sbr.rel (0) target = $region21
    $region20: #{vanet_forward_fused.1} parent=1 // pred_region
      _
    $region21: #{vanet_forward_fused.1} parent=1 // pred_fallthru
      _
    // Predicated region
    $region22: #{vanet_forward_fused.1} parent=1 // pred_check
      _
    $region23: #{vanet_forward_fused.1} parent=1 // pred_check_branch
      %51 = sbr.rel (0) target = $region25
    $region24: #{vanet_forward_fused.1} parent=1 // pred_region
      %52 = dma.done [#allocation3], 32
    $region25: #{vanet_forward_fused.1} parent=1 // pred_fallthru
      _
    // Predicated region
    $region26: #{vanet_forward_fused.1} parent=1 // pred_check
      _
    $region27: #{vanet_forward_fused.1} parent=1 // pred_check_branch
      %54 = sbr.rel (0) target = $region29
    $region28: #{vanet_forward_fused.1} parent=1 // pred_region
      %55 = dma.done [#allocation5], 256
    $region29: #{vanet_forward_fused.1} parent=1 // pred_fallthru
      _
    // Predicated region
    $region30: #{vanet_forward_fused.1} parent=1 // pred_check
      _
    $region31: #{vanet_forward_fused.1} parent=1 // pred_check_branch
      %57 = sbr.rel (0) target = $region33
    $region32: #{vanet_forward_fused.1} parent=1 // pred_region
      %58 = dma.done [#allocation5], 512
    $region33: #{vanet_forward_fused.1} parent=1 // pred_fallthru
      _
    %v59 = vld [vmem:[#allocation2] sm:$0x3]
    %v60 = vld [vmem:[#allocation4] sm:$0xff]
    %v61 = vld [vmem:[#allocation4 + $0x8] sm:$0xff]
    %v62 = vld [vmem:[%s2] sm:$0x1]
    %v64 = vlaneseq
    %v65 = vshrl.u32 %v64, 7
    %v66 = vsub.s32 0, %v65
    %v67 = vrot.slane %v62, %v66
    %vm69 = vcmask 130048
    %v71 = vsel %vm69, %v59, 0
    %73 = vmatprep.subr.mxu0 0.0
    %74 = vmatpush1.msra.mxu0 %v60
    %75 = vmatprep.subr.mxu0 0.0
    %76 = vmatpush1.msra.mxu0 %v61
    %77 = vmatprep.subr.mxu0 0.0
    %78 = vmatpush1.msra.mxu0 0.0
    %79 = vmatprep.subr.mxu0 0.0
    %80 = vmatpush1.msra.mxu0 0.0
    %81 = vmatprep.subr.mxu0 0.0
    %82 = vmatpush1.msra.mxu0 0.0
    %83 = vmatprep.subr.mxu0 0.0
    %84 = vmatpush1.msra.mxu0 0.0
    %85 = vmatprep.subr.mxu0 0.0
    %86 = vmatpush1.msra.mxu0 0.0
    %87 = vmatprep.subr.mxu0 0.0
    %88 = vmatpush1.msra.mxu0 0.0
    %89 = vmatprep.subr.mxu0 0.0
    %90 = vmatpush1.msra.mxu0 0.0
    %91 = vmatprep.subr.mxu0 0.0
    %92 = vmatpush1.msra.mxu0 0.0
    %93 = vmatprep.subr.mxu0 0.0
    %94 = vmatpush1.msra.mxu0 0.0
    %95 = vmatprep.subr.mxu0 0.0
    %96 = vmatpush1.msra.mxu0 0.0
    %97 = vmatprep.subr.mxu0 0.0
    %98 = vmatpush1.msra.mxu0 0.0
    %99 = vmatprep.subr.mxu0 0.0
    %100 = vmatpush1.msra.mxu0 0.0
    %101 = vmatprep.subr.mxu0 0.0
    %102 = vmatpush1.msra.mxu0 0.0
    %103 = vmatprep.subr.mxu0 0.0
    %104 = vmatpush1.msra.mxu0 0.0
    %105 = vmatprep.subr.mxu0 0.0
    %106 = vmatpush1.msra.mxu0 0.0
    %107 = vmatprep.subr.mxu0 0.0
    %108 = vmatpush1.msra.mxu0 0.0
    %109 = vmatprep.subr.mxu0 0.0
    %110 = vmatpush1.msra.mxu0 0.0
    %111 = vmatprep.subr.mxu0 0.0
    %112 = vmatpush1.msra.mxu0 0.0
    %113 = vmatprep.subr.mxu0 0.0
    %114 = vmatpush1.msra.mxu0 0.0
    %115 = vmatprep.subr.mxu0 0.0
    %116 = vmatpush1.msra.mxu0 0.0
    %117 = vmatprep.subr.mxu0 0.0
    %118 = vmatpush1.msra.mxu0 0.0
    %119 = vmatprep.subr.mxu0 0.0
    %120 = vmatpush1.msra.mxu0 0.0
    %121 = vmatprep.subr.mxu0 0.0
    %122 = vmatpush1.msra.mxu0 0.0
    %123 = vmatprep.subr.mxu0 0.0
    %124 = vmatpush1.msra.mxu0 0.0
    %125 = vmatprep.subr.mxu0 0.0
    %126 = vmatpush1.msra.mxu0 0.0
    %127 = vmatprep.subr.mxu0 0.0
    %128 = vmatpush1.msra.mxu0 0.0
    %129 = vmatprep.subr.mxu0 0.0
    %130 = vmatpush1.msra.mxu0 0.0
    %131 = vmatprep.subr.mxu0 0.0
    %132 = vmatpush1.msra.mxu0 0.0
    %133 = vmatprep.subr.mxu0 0.0
    %134 = vmatpush1.msra.mxu0 0.0
    %135 = vmatprep.subr.mxu0 0.0
    %136 = vmatpush1.msra.mxu0 0.0
    %137 = vmatprep.mubr.f32.mxu0 0.0
    %138 = vmatmul.mubr.f32.gmra.mrb[0].mxu0 %v71
    %v139 = vpop.f32.mrb[0].mxu0
    %v140 = vadd.f32 %v67, %v139
    %v141 = vpop.f32.mrb[0].mxu0
    %142 = vdwg.mxu0
    %v143 = vmax.f32 %v140, 0.0
    %v144 = vld [vmem:[#allocation6] sm:$0xff]
    %v145 = vld [vmem:[#allocation6 + $0x8] sm:$0xff]
    %v146 = vld [vmem:[#allocation6 + $0x10] sm:$0xff]
    %v147 = vld [vmem:[#allocation6 + $0x18] sm:$0xff]
    %v148 = vld [vmem:[%s4] sm:$0x1]
    %v150 = vlaneseq
    %v151 = vshrl.u32 %v150, 7
    %v152 = vsub.s32 0, %v151
    %v153 = vrot.slane %v148, %v152
    %vm155 = vcmask 261120
    %v157 = vsel %vm155, %v143, 0
    %159 = vmatprep.subr.mxu0 0.0
    %160 = vmatpush1.msra.mxu0 %v144
    %161 = vmatprep.subr.mxu0 0.0
    %162 = vmatpush1.msra.mxu0 %v145
    %163 = vmatprep.subr.mxu0 0.0
    %164 = vmatpush1.msra.mxu0 %v146
    %165 = vmatprep.subr.mxu0 0.0
    %166 = vmatpush1.msra.mxu0 %v147
    %167 = vmatprep.subr.mxu0 0.0
    %168 = vmatpush1.msra.mxu0 0.0
    %169 = vmatprep.subr.mxu0 0.0
    %170 = vmatpush1.msra.mxu0 0.0
    %171 = vmatprep.subr.mxu0 0.0
    %172 = vmatpush1.msra.mxu0 0.0
    %173 = vmatprep.subr.mxu0 0.0
    %174 = vmatpush1.msra.mxu0 0.0
    %175 = vmatprep.subr.mxu0 0.0
    %176 = vmatpush1.msra.mxu0 0.0
    %177 = vmatprep.subr.mxu0 0.0
    %178 = vmatpush1.msra.mxu0 0.0
    %179 = vmatprep.subr.mxu0 0.0
    %180 = vmatpush1.msra.mxu0 0.0
    %181 = vmatprep.subr.mxu0 0.0
    %182 = vmatpush1.msra.mxu0 0.0
    %183 = vmatprep.subr.mxu0 0.0
    %184 = vmatpush1.msra.mxu0 0.0
    %185 = vmatprep.subr.mxu0 0.0
    %186 = vmatpush1.msra.mxu0 0.0
    %187 = vmatprep.subr.mxu0 0.0
    %188 = vmatpush1.msra.mxu0 0.0
    %189 = vmatprep.subr.mxu0 0.0
    %190 = vmatpush1.msra.mxu0 0.0
    %191 = vmatprep.subr.mxu0 0.0
    %192 = vmatpush1.msra.mxu0 0.0
    %193 = vmatprep.subr.mxu0 0.0
    %194 = vmatpush1.msra.mxu0 0.0
    %195 = vmatprep.subr.mxu0 0.0
    %196 = vmatpush1.msra.mxu0 0.0
    %197 = vmatprep.subr.mxu0 0.0
    %198 = vmatpush1.msra.mxu0 0.0
    %199 = vmatprep.subr.mxu0 0.0
    %200 = vmatpush1.msra.mxu0 0.0
    %201 = vmatprep.subr.mxu0 0.0
    %202 = vmatpush1.msra.mxu0 0.0
    %203 = vmatprep.subr.mxu0 0.0
    %204 = vmatpush1.msra.mxu0 0.0
    %205 = vmatprep.subr.mxu0 0.0
    %206 = vmatpush1.msra.mxu0 0.0
    %207 = vmatprep.subr.mxu0 0.0
    %208 = vmatpush1.msra.mxu0 0.0
    %209 = vmatprep.subr.mxu0 0.0
    %210 = vmatpush1.msra.mxu0 0.0
    %211 = vmatprep.subr.mxu0 0.0
    %212 = vmatpush1.msra.mxu0 0.0
    %213 = vmatprep.subr.mxu0 0.0
    %214 = vmatpush1.msra.mxu0 0.0
    %215 = vmatprep.subr.mxu0 0.0
    %216 = vmatpush1.msra.mxu0 0.0
    %217 = vmatprep.subr.mxu0 0.0
    %218 = vmatpush1.msra.mxu0 0.0
    %219 = vmatprep.subr.mxu0 0.0
    %220 = vmatpush1.msra.mxu0 0.0
    %221 = vmatprep.subr.mxu0 0.0
    %222 = vmatpush1.msra.mxu0 0.0
    %223 = vmatprep.mubr.f32.mxu0 0.0
    %224 = vmatmul.mubr.f32.gmra.mrb[0].mxu0 %v157
    %v225 = vpop.f32.mrb[0].mxu0
    %v226 = vadd.f32 %v153, %v225
    %v227 = vpop.f32.mrb[0].mxu0
    %228 = vdwg.mxu0
    %229 = vst [vmem:[%s5] sm:$0x3] %v226
    // Predicated region
    $region34: #{vanet_forward_fused.1} parent=1 // pred_check
      _
    $region35: #{vanet_forward_fused.1} parent=1 // pred_check_branch
      %231 = sbr.rel (0) target = $region37
    $region36: #{vanet_forward_fused.1} parent=1 // pred_region
      _
    $region37: #{vanet_forward_fused.1} parent=1 // pred_fallthru
      _
    // Predicated region
    $region38: #{vanet_forward_fused.1} parent=1 // pred_check
      _
    $region39: #{vanet_forward_fused.1} parent=1 // pred_check_branch
      %233 = sbr.rel (0) target = $region41
    $region40: #{vanet_forward_fused.1} parent=1 // pred_region
      _
    $region41: #{vanet_forward_fused.1} parent=1 // pred_fallthru
      _
    %234 = vsyncpa [#allocation3], 1
    %235 = vsyncpa [#allocation5], 1

</llo_original>
